<compile_context>
chip_gen: v7x
topology: tpu7x:2x2x1
jax: 0.10.0
libtpu: 0.0.40
codegen_flags: <defaults>
</compile_context>

<pallas_src>
import functools

import jax
import jax.numpy as jnp
from jax.experimental import pallas as pl
from jax.experimental.pallas import tpu as pltpu

_LANE = 128
_SUBLANE = 8


def _round_up(x: int, m: int) -> int:
    return ((x + m - 1) // m) * m


def _cdiv(a: int, b: int) -> int:
    return (a + b - 1) // b


def _review_classifier_kernel(x_ref, w_ref, b_ref, o_ref, acc_ref, *,
                              apply_sigmoid: bool, num_features: int, tf: int,
                              feat_ragged: bool, w_resident: bool):
    """One (TB, TF) tile of the GEMV  y = x @ w.T + b.

    Grid = (batch_tiles [parallel], feature_tiles [arbitrary / reduction]).

    x_ref:   (TB, TF)       streamed VMEM tile of x (edge blocks hold unspecified data)
    w_ref:   (1, PF|TF)     weight row (whole zero-padded row if resident, else a tile)
    b_ref:   (1, 1)         SMEM scalar bias
    o_ref:   (TB, 1)        output tile, resident across the reduction axis
    acc_ref: (TB, 128)      lane-dense f32 accumulator scratch
    """
    k = pl.program_id(1)

    @pl.when(k == 0)
    def _():
        acc_ref[...] = jnp.zeros_like(acc_ref)

    n_chunks = tf // _LANE
    base = k * tf  # global feature offset of this tile

    lane = None
    if feat_ragged:
        lane = jax.lax.broadcasted_iota(jnp.int32, (1, _LANE), 1)

    def chunk_product(c):
        # (TB, 128) f32 partial product for lane-chunk c of this feature tile.
        # Upcast happens per-chunk, so bf16 tiles never materialize a full f32 copy.
        xc = x_ref[:, pl.ds(c * _LANE, _LANE)].astype(jnp.float32)
        w_off = (base + c * _LANE) if w_resident else (c * _LANE)
        wc = w_ref[:, pl.ds(pl.multiple_of(w_off, _LANE), _LANE)].astype(jnp.float32)
        prod = xc * wc  # (TB, 128), VPU only
        if feat_ragged:
            # Edge-block x contents are unspecified (could be NaN); zero-padded
            # weights alone are not enough (0 * NaN = NaN), so mask the product.
            valid = num_features - (base + c * _LANE)
            prod = jnp.where(lane < valid, prod, 0.0)
        return prod

    # Sum chunks in small groups before touching the VMEM accumulator: fewer
    # (TB,128) read-modify-writes through the single vector-store slot (v5e/v6e).
    group_size = 4
    for g0 in range(0, n_chunks, group_size):
        group = chunk_product(g0)
        for c in range(g0 + 1, min(g0 + group_size, n_chunks)):
            group = group + chunk_product(c)
        acc_ref[...] += group

    @pl.when(k == pl.num_programs(1) - 1)
    def _():
        # Single cross-lane (XLU) reduce per batch tile, then bias (+ sigmoid).
        y = jnp.sum(acc_ref[...], axis=-1, keepdims=True) + b_ref[0, 0]
        if apply_sigmoid:
            y = jax.nn.sigmoid(y)
        o_ref[...] = y.astype(o_ref.dtype)


def review_classifier_forward(x, weight, bias, apply_sigmoid: bool = False,
                              *, tb: int = 1024, tf: int = 2048):
    """Forward pass of ReviewClassifier.

    Args:
      x:      (batch, num_features) float32 or bfloat16 (bf16 halves HBM traffic;
              accumulation is always f32).
      weight: (1, num_features)     nn.Linear weight
      bias:   (1,)                  nn.Linear bias
      apply_sigmoid: static flag (matches the PyTorch semantics)
      tb, tf: batch / feature tile sizes (rounded to (8, 128) alignment).

    Returns:
      (batch,) float32 logits/probs (0-d for batch == 1, matching `.squeeze()`).
    """
    batch, num_features = x.shape
    assert weight.shape == (1, num_features)

    # --- tile sizing ---------------------------------------------------------
    tb = _round_up(max(tb, _SUBLANE), _SUBLANE)
    tf = _round_up(max(tf, _LANE), _LANE)
    tb = min(tb, _round_up(batch, _SUBLANE))
    tf = min(tf, _round_up(num_features, _LANE))
    # v7x has 2 TensorCores: keep >= 2 blocks on the 'parallel' batch axis whenever
    # the batch can be split, so the second core (and its HBM bandwidth) is not idle.
    if batch > _SUBLANE and _cdiv(batch, tb) < 2:
        tb = max(_SUBLANE, _round_up(_cdiv(batch, 2), _SUBLANE))

    grid = (_cdiv(batch, tb), _cdiv(num_features, tf))
    pf = grid[1] * tf                      # feature extent covered by the grid
    feat_ragged = (num_features % tf) != 0

    # x is NOT padded (avoids an extra full HBM pass).  Only the tiny weight row is
    # zero-padded so in-kernel pl.ds slices of it never run out of bounds.
    if pf != num_features:
        weight = jnp.pad(weight, ((0, 0), (0, pf - num_features)))
    bias2d = bias.reshape(1, 1).astype(jnp.float32)

    x_bytes = jnp.dtype(x.dtype).itemsize
    w_bytes = jnp.dtype(weight.dtype).itemsize

    # Keep the whole weight row resident unless the vocabulary is huge.
    w_resident = (_SUBLANE * pf * w_bytes) <= (2 << 20)
    if w_resident:
        w_spec = pl.BlockSpec((1, pf), lambda i, k: (0, 0))     # DMA'd once, resident
        w_vmem = 2 * _SUBLANE * pf * w_bytes
    else:
        w_spec = pl.BlockSpec((1, tf), lambda i, k: (0, k))     # streamed per k step
        w_vmem = 2 * _SUBLANE * tf * w_bytes

    # --- VMEM budget, including (8,128) layout padding -----------------------
    vmem_limit = int(
        2 * tb * tf * x_bytes          # x tiles, double-buffered
        + w_vmem                       # weight row (sublane-padded to 8)
        + 2 * tb * _LANE * 4           # (tb,1) f32 output tiles pad to 128 lanes, x2 buffers
        + tb * _LANE * 4               # (tb,128) f32 accumulator scratch
        + (4 << 20)                    # headroom for compiler temporaries
    )
    vmem_limit = max(16 << 20, min(vmem_limit, 48 << 20))

    kernel = functools.partial(
        _review_classifier_kernel,
        apply_sigmoid=apply_sigmoid,
        num_features=num_features,
        tf=tf,
        feat_ragged=feat_ragged,
        w_resident=w_resident,
    )

    cost = pl.CostEstimate(
        flops=int(2 * batch * num_features),
        transcendentals=int(batch if apply_sigmoid else 0),
        bytes_accessed=int(batch * num_features * x_bytes + pf * w_bytes + batch * 4 + 4),
    )

    y = pl.pallas_call(
        kernel,
        out_shape=jax.ShapeDtypeStruct((batch, 1), jnp.float32),
        grid=grid,
        in_specs=[
            pl.BlockSpec((tb, tf), lambda i, k: (i, k)),            # streamed x tile
            w_spec,                                                 # weight row
            pl.BlockSpec(memory_space=pltpu.MemorySpace.SMEM),      # bias scalar
        ],
        out_specs=pl.BlockSpec((tb, 1), lambda i, k: (i, 0)),       # resident over k
        scratch_shapes=[pltpu.VMEM((tb, _LANE), jnp.float32)],
        compiler_params=pltpu.CompilerParams(
            dimension_semantics=("parallel", "arbitrary"),
            vmem_limit_bytes=vmem_limit,
        ),
        cost_estimate=cost,
    )(x, weight, bias2d)

    # Matches PyTorch `.squeeze()`: (batch,) for batch > 1, 0-d for batch == 1.
    return jnp.squeeze(y)


if __name__ == "__main__":
    key = jax.random.PRNGKey(0)
    k_x, k_w, k_b, k_x2, k_x3 = jax.random.split(key, 5)

    # --- Test 1: tiny shapes consistent with the module -------------------------------------
    batch, num_features = 8, 32
    bound = 1.0 / (num_features ** 0.5)
    weight = jax.random.uniform(k_w, (1, num_features), jnp.float32, -bound, bound)
    bias = jax.random.uniform(k_b, (1,), jnp.float32, -bound, bound)
    x = jax.random.normal(k_x, (batch, num_features), jnp.float32)

    y_logits = review_classifier_forward(x, weight, bias, apply_sigmoid=False)
    y_probs = review_classifier_forward(x, weight, bias, apply_sigmoid=True)
    jax.block_until_ready((y_logits, y_probs))

    ref_logits = jnp.squeeze(jnp.sum(x * weight, axis=-1, keepdims=True) + bias)
    ref_probs = jax.nn.sigmoid(ref_logits)
    assert y_logits.shape == (batch,)
    assert jnp.allclose(y_logits, ref_logits, atol=1e-5, rtol=1e-5)
    assert jnp.allclose(y_probs, ref_probs, atol=1e-5, rtol=1e-5)

    # --- Test 2: ragged batch + ragged feature tail (unpadded edge blocks + lane mask) ------
    batch2, nf2 = 200, 300
    bound2 = 1.0 / (nf2 ** 0.5)
    w2 = jax.random.uniform(k_w, (1, nf2), jnp.float32, -bound2, bound2)
    b2 = jax.random.uniform(k_b, (1,), jnp.float32, -bound2, bound2)
    x2 = jax.random.normal(k_x2, (batch2, nf2), jnp.float32)
    y2 = review_classifier_forward(x2, w2, b2, apply_sigmoid=True, tb=64, tf=128)
    jax.block_until_ready(y2)
    ref2 = jax.nn.sigmoid(jnp.sum(x2 * w2, axis=-1) + b2[0])
    assert y2.shape == (batch2,)
    assert jnp.allclose(y2, ref2, atol=1e-5, rtol=1e-5)

    # --- Test 3: bf16 input (per-chunk upcast path), same shapes ----------------------------
    x2_bf16 = x2.astype(jnp.bfloat16)
    y3 = review_classifier_forward(x2_bf16, w2, b2, apply_sigmoid=False)
    jax.block_until_ready(y3)
    ref3 = jnp.sum(x2_bf16.astype(jnp.float32) * w2, axis=-1) + b2[0]
    assert jnp.allclose(y3, ref3, atol=1e-4, rtol=1e-4)

    # --- Test 4: default tiles, batch auto-split into >= 2 parallel blocks, multi-chunk -----
    batch4, nf4 = 96, 512
    bound4 = 1.0 / (nf4 ** 0.5)
    w4 = jax.random.uniform(k_w, (1, nf4), jnp.float32, -bound4, bound4)
    b4 = jax.random.uniform(k_b, (1,), jnp.float32, -bound4, bound4)
    x4 = jax.random.normal(k_x3, (batch4, nf4), jnp.float32)
    y4 = review_classifier_forward(x4, w4, b4, apply_sigmoid=False)
    jax.block_until_ready(y4)
    ref4 = jnp.sum(x4 * w4, axis=-1) + b4[0]
    assert y4.shape == (batch4,)
    assert jnp.allclose(y4, ref4, atol=1e-5, rtol=1e-5)

    print("KERNEL_OK")
</pallas_src>

<mosaic_0001>
module attributes {stable_mosaic.version = 11 : i64} {
  func.func @_review_classifier_kernel(%arg0: i32, %arg1: i32, %arg2: memref<8x128xf32, #tpu.memory_space<vmem>>, %arg3: memref<1x128xf32, #tpu.memory_space<vmem>>, %arg4: memref<1x1xf32, #tpu.memory_space<smem>>, %arg5: memref<8x1xf32, #tpu.memory_space<vmem>>, %arg6: memref<8x128xf32, #tpu.memory_space<vmem>>) attributes {dimension_semantics = [#tpu.dimension_semantics<parallel>, #tpu.dimension_semantics<arbitrary>], iteration_bounds = array<i64: 1, 1>, scalar_prefetch = 0 : i64, scratch_operands = 1 : i64, tpu.core_type = #tpu.core_type<tc>, window_params = [{transform_indices = @transform_0, window_bounds = array<i64: 8, 128>}, {pipeline_mode = #tpu.pipeline_mode<synchronous>, transform_indices = @transform_1, window_bounds = array<i64: 1, 128>}, {transform_indices = @transform_2, window_bounds = array<i64: 1, 1>}, {transform_indices = @transform_3, window_bounds = array<i64: 8, 1>}]} {
    %c0_i32 = arith.constant 0 : i32
    %0 = arith.cmpi eq, %arg1, %c0_i32 : i32
    %1 = arith.extui %0 : i1 to i32
    %c0_i32_0 = arith.constant 0 : i32
    %2 = arith.cmpi ne, %1, %c0_i32_0 : i32
    scf.if %2 {
      %cst_11 = arith.constant 0.000000e+00 : f32
      %26 = vector.broadcast %cst_11 : f32 to vector<8x128xf32>
      %c0_12 = arith.constant 0 : index
      %c0_13 = arith.constant 0 : index
      %27 = vector.load %arg6[%c0_12, %c0_13] : memref<8x128xf32, #tpu.memory_space<vmem>>, vector<8x128xf32>
      tpu.vector_store %arg6[%c0_12, %c0_13], %26 {strides = array<i32>} : memref<8x128xf32, #tpu.memory_space<vmem>>, vector<8x128xf32>,
    } else {
    }
    %c128_i32 = arith.constant 128 : i32
    %3 = arith.muli %arg1, %c128_i32 : i32
    %4 = tpu.iota {dimensions = array<i32: 1>} : vector<1x128xi32>
    %c0 = arith.constant 0 : index
    %c0_1 = arith.constant 0 : index
    %5 = vector.load %arg2[%c0, %c0_1] : memref<8x128xf32, #tpu.memory_space<vmem>>, vector<8x128xf32>
    %c0_i32_2 = arith.constant 0 : i32
    %6 = arith.addi %3, %c0_i32_2 : i32
    %7 = tpu.assume_multiple %6, 128 : i32
    %c0_3 = arith.constant 0 : index
    %8 = arith.index_cast %7 : i32 to index
    %9 = vector.load %arg3[%c0_3, %8] : memref<1x128xf32, #tpu.memory_space<vmem>>, vector<1x128xf32>
    %10 = vector.broadcast %9 : vector<1x128xf32> to vector<8x128xf32>
    %11 = arith.mulf %5, %10 : vector<8x128xf32>
    %c0_i32_4 = arith.constant 0 : i32
    %12 = arith.addi %3, %c0_i32_4 : i32
    %c32_i32 = arith.constant 32 : i32
    %13 = arith.subi %c32_i32, %12 : i32
    %14 = vector.broadcast %13 : i32 to vector<1x128xi32>
    %15 = arith.cmpi slt, %4, %14 : vector<1x128xi32>
    %cst = arith.constant 0.000000e+00 : f32
    %16 = vector.shape_cast %15 : vector<1x128xi1> to vector<1x128xi1>
    %17 = vector.broadcast %16 : vector<1x128xi1> to vector<8x128xi1>
    %18 = vector.broadcast %cst : f32 to vector<8x128xf32>
    %19 = arith.select %17, %11, %18 : vector<8x128xi1>, vector<8x128xf32>
    %c0_5 = arith.constant 0 : index
    %c0_6 = arith.constant 0 : index
    %20 = vector.load %arg6[%c0_5, %c0_6] : memref<8x128xf32, #tpu.memory_space<vmem>>, vector<8x128xf32>
    %21 = arith.addf %20, %19 : vector<8x128xf32>
    %c0_7 = arith.constant 0 : index
    %c0_8 = arith.constant 0 : index
    %22 = vector.load %arg6[%c0_7, %c0_8] : memref<8x128xf32, #tpu.memory_space<vmem>>, vector<8x128xf32>
    tpu.vector_store %arg6[%c0_7, %c0_8], %21 {strides = array<i32>} : memref<8x128xf32, #tpu.memory_space<vmem>>, vector<8x128xf32>,
    %c0_i32_9 = arith.constant 0 : i32
    %23 = arith.cmpi eq, %arg1, %c0_i32_9 : i32
    %24 = arith.extui %23 : i1 to i32
    %c0_i32_10 = arith.constant 0 : i32
    %25 = arith.cmpi ne, %24, %c0_i32_10 : i32
    scf.if %25 {
      %c0_11 = arith.constant 0 : index
      %c0_12 = arith.constant 0 : index
      %26 = vector.load %arg6[%c0_11, %c0_12] : memref<8x128xf32, #tpu.memory_space<vmem>>, vector<8x128xf32>
      %cst_13 = arith.constant dense<0.000000e+00> : vector<8xf32>
      %27 = vector.multi_reduction <add>, %26, %cst_13 [1] : vector<8x128xf32> to vector<8xf32>
      %28 = vector.shape_cast %27 : vector<8xf32> to vector<8x1xf32>
      %c0_14 = arith.constant 0 : index
      %c0_15 = arith.constant 0 : index
      %29 = memref.load %arg4[%c0_14, %c0_15] : memref<1x1xf32, #tpu.memory_space<smem>>
      %30 = vector.broadcast %29 : f32 to vector<8x1xf32>
      %31 = arith.addf %28, %30 : vector<8x1xf32>
      %c0_16 = arith.constant 0 : index
      %c0_17 = arith.constant 0 : index
      %32 = vector.load %arg5[%c0_16, %c0_17] : memref<8x1xf32, #tpu.memory_space<vmem>>, vector<8x1xf32>
      tpu.vector_store %arg5[%c0_16, %c0_17], %31 {strides = array<i32>} : memref<8x1xf32, #tpu.memory_space<vmem>>, vector<8x1xf32>,
    } else {
    }
    return
  }
  func.func @transform_0(%arg0: i32, %arg1: i32) -> (i32, i32) {
    %c0_i32 = arith.constant 0 : i32
    return %arg0, %arg1 : i32, i32
  }
  func.func @transform_1(%arg0: i32, %arg1: i32) -> (i32, i32) {
    %c0_i32 = arith.constant 0 : i32
    %c0_i32_0 = arith.constant 0 : i32
    %c0_i32_1 = arith.constant 0 : i32
    return %c0_i32, %c0_i32_0 : i32, i32
  }
  func.func @transform_2(%arg0: i32, %arg1: i32) -> (i32, i32) {
    %c0_i32 = arith.constant 0 : i32
    %c0_i32_0 = arith.constant 0 : i32
    %c0_i32_1 = arith.constant 0 : i32
    return %c0_i32, %c0_i32_0 : i32, i32
  }
  func.func @transform_3(%arg0: i32, %arg1: i32) -> (i32, i32) {
    %c0_i32 = arith.constant 0 : i32
    %c0_i32_0 = arith.constant 0 : i32
    return %arg0, %c0_i32 : i32, i32
  }
}

</mosaic_0001>

<llo_original>
// kernel: tpu_custom_call.1
$region0: #{tpu_custom_call.1}
  #allocation0 [shape = 'u32[]', space=smem, size = 0x4, offset = 0x4, fixed_abs, tag = 'smem constant byte address 0x4 - core index']
  #allocation1 [shape = 'u32[144,128]{1,0:T(1,128)}', space=vmem, size = 0x12000, scoped, tag = 'internal scratch']
  #allocation2 [shape = 'f32[8,128]{1,0:T(8,128)}', space=vmem, size = 0x1000, scoped, tag = 'scratch operand']
  #allocation3 [shape = 'f32[1,1]{1,0:T(1,128)S(6)}', space=smem, size = 0x200, scoped, tag = 'scoped memory for tpu_custom_call.1']
  %s0 = inlined_call_operand.hbm [shape: f32[8,32], index: 0, kind: input, shape index: {}]
  %s1 = inlined_call_operand.vmem [shape: f32[1,128], index: 1, kind: input, shape index: {}]
  %s2 = inlined_call_operand.<no memory space> [shape: f32[1,1], index: 2, kind: input, shape index: {}]
  %s3 = inlined_call_operand.vmem [shape: f32[8,1], index: 3, kind: output, shape index: {}]
  %s4 = sld [smem:[#allocation0]]
  $region34: #{tpu_custom_call.1} parent=0
    _
  %s6 = ssub.s32 1, %s4
  %s7 = scalar_select 0, %s6, %s4
  %8 = sst [smem:[#allocation3]] %s2
  $region1: #{tpu_custom_call.1} parent=0
    #allocation4 [shape = 'u8[4096]{0}', space=vmem, size = 0x1000, scoped, tag = 'input window, operand 0, single buffered']
    #allocation5 [shape = 's32[1]{0}', space=sflag, size = 0x4, scoped, tag = 'scoped memory for tpu_custom_call.1']
    %9 = vsyncpa [#allocation5], 0
    // Predicated region
    $region2: #{tpu_custom_call.1} parent=1 // pred_check
      _
    $region3: #{tpu_custom_call.1} parent=1 // pred_check_branch
      %11 = sbr.rel (0) target = $region5
    $region4: #{tpu_custom_call.1} parent=1 // pred_region
      %s13 = ssub.s32 128, 128
      %14 = vsyncadd [#allocation5], %s13
      %s16 = sshll.u32 [#allocation4], 4
      %s17 = int_to_ptr.vmem [resolvable:$true] %s16
      %19 = dma.hbm_to_vmem [thread:$0]  %s0, 128, %s17, [#allocation5]
    $region5: #{tpu_custom_call.1} parent=1 // pred_fallthru
      _
    // Predicated region
    $region6: #{tpu_custom_call.1} parent=1 // pred_check
      _
    $region7: #{tpu_custom_call.1} parent=1 // pred_check_branch
      %21 = sbr.rel (0) target = $region9
    $region8: #{tpu_custom_call.1} parent=1 // pred_region
      _
    $region9: #{tpu_custom_call.1} parent=1 // pred_fallthru
      _
    // Predicated region
    $region10: #{tpu_custom_call.1} parent=1 // pred_check
      _
    $region11: #{tpu_custom_call.1} parent=1 // pred_check_branch
      %23 = sbr.rel (0) target = $region13
    $region12: #{tpu_custom_call.1} parent=1 // pred_region
      _
    $region13: #{tpu_custom_call.1} parent=1 // pred_fallthru
      _
    // Predicated region
    $region14: #{tpu_custom_call.1} parent=1 // pred_check
      _
    $region15: #{tpu_custom_call.1} parent=1 // pred_check_branch
      %25 = sbr.rel (0) target = $region17
    $region16: #{tpu_custom_call.1} parent=1 // pred_region
      %26 = dma.done [#allocation5], 128
    $region17: #{tpu_custom_call.1} parent=1 // pred_fallthru
      _
    %p27 = scmp.eq.s32.totalorder 0, 0
    // Predicated region
    $region18: #{tpu_custom_call.1} parent=1 // pred_check
      %p28 = pneg %p27
    $region19: #{tpu_custom_call.1} parent=1 // pred_check_branch
      %30 = sbr.rel (%p28) target = $region21
    $region20: #{tpu_custom_call.1} parent=1 // pred_region
      %31 = vst [vmem:[#allocation2] sm:$0xff] 0.0
    $region21: #{tpu_custom_call.1} parent=1 // pred_fallthru
      _
    %s32 = smul.u32 0, 128
    %v33 = vlaneseq
    %v34 = vand.u32 %v33, 127
    %v35 = vld [vmem:[#allocation4] sm:$0xff]
    %s36 = sshra.s32 %s32, 7
    %s37 = sand.u32 %s32, 127
    %s38 = scalar_lea.vmem %s1, %s36
    %v39 = vld [vmem:[%s38] sm:$0x1]
    %v41 = vlaneseq
    %v42 = vshrl.u32 %v41, 7
    %v43 = vsub.s32 0, %v42
    %v44 = vrot.slane %v39, %v43
    %v46 = vmul.f32 %v35, %v44
    %s47 = ssub.s32 32, %s32
    %v48 = vstv %s47
    %vm49 = vcmp.lt.s32.totalorder %v34, %v48
    %v50 = vsel %vm49, 1, 0
    %vm51 = vcmp.eq.s32.totalorder %v50, 1
    %v52 = vsel %vm51, %v46, 0.0
    %v53 = vld [vmem:[#allocation2] sm:$0xff]
    %v54 = vadd.f32 %v53, %v52
    %55 = vst [vmem:[#allocation2] sm:$0xff] %v54
    // Predicated region
    $region22: #{tpu_custom_call.1} parent=1 // pred_check
      %p56 = pneg %p27
    $region23: #{tpu_custom_call.1} parent=1 // pred_check_branch
      %58 = sbr.rel (%p56) target = $region25
    $region24: #{tpu_custom_call.1} parent=1 // pred_region
      %v59 = vld [vmem:[#allocation2] sm:$0xff]
      %60 = vadd.xlane.f32.xlu0 %v59
      %v61 = vpop.xlane.xlu0 %60
      %s62 = sld [smem:[#allocation3]]
      %v63 = vstv %s62
      %v64 = vadd.f32 %v61, %v63
      %vm65 = vcmask 7168
      %66 = vst.msk [vmem:[%s3] sm:$0xff] %vm65, %v64
    $region25: #{tpu_custom_call.1} parent=1 // pred_fallthru
      _
    // Predicated region
    $region26: #{tpu_custom_call.1} parent=1 // pred_check
      _
    $region27: #{tpu_custom_call.1} parent=1 // pred_check_branch
      %68 = sbr.rel (0) target = $region29
    $region28: #{tpu_custom_call.1} parent=1 // pred_region
      _
    $region29: #{tpu_custom_call.1} parent=1 // pred_fallthru
      _
    // Predicated region
    $region30: #{tpu_custom_call.1} parent=1 // pred_check
      _
    $region31: #{tpu_custom_call.1} parent=1 // pred_check_branch
      %70 = sbr.rel (0) target = $region33
    $region32: #{tpu_custom_call.1} parent=1 // pred_region
      _
    $region33: #{tpu_custom_call.1} parent=1 // pred_fallthru
      _
    %71 = vsyncpa [#allocation5], 1

</llo_original>
